<compile_context>
chip_gen: v7x
topology: tpu7x:2x2x1
jax: 0.10.0
libtpu: 0.0.40
codegen_flags: <defaults>
</compile_context>

<pallas_src>
import math
from functools import partial

import jax
import jax.numpy as jnp
from jax.experimental import pallas as pl
from jax.experimental.pallas import tpu as pltpu

IN_FEATURES = 20
HIDDEN = 256
OUT_FEATURES = 10

K_PAD = 128    # padded contraction dim for the first matmul (lane-aligned)
N_PAD = 128    # padded output feature dim (lane-dense stores)
DEFAULT_TB = 128


def _round_up(x, m):
    return (x + m - 1) // m * m


def mlp_kernel(x_ref, w1_ref, b1_ref, w2_ref, b2_ref, o_ref):
    # x_ref:  (TB, K_PAD)     bf16
    # w1_ref: (K_PAD, HIDDEN) bf16   (W1^T, zero-padded rows 20..127)
    # b1_ref: (1, HIDDEN)     f32
    # w2_ref: (HIDDEN, N_PAD) bf16   (W2^T, zero-padded cols 10..127)
    # b2_ref: (1, N_PAD)      f32    (zero-padded cols 10..127)
    # o_ref:  (TB, N_PAD)     f32
    h = jnp.dot(x_ref[...], w1_ref[...], preferred_element_type=jnp.float32)
    h = jnp.maximum(h + b1_ref[...], 0.0)                 # bias + ReLU in f32
    o = jnp.dot(h.astype(jnp.bfloat16), w2_ref[...],
                preferred_element_type=jnp.float32)
    o_ref[...] = (o + b2_ref[...]).astype(o_ref.dtype)


def prepare_params(w1, b1, w2, b2):
    """One-time weight prep (transpose, pad, bf16 cast) hoisted out of the forward path.

    w1: (256, 20), b1: (256,), w2: (10, 256), b2: (10,) -- torch.nn.Linear layout.
    """
    w1_t = jnp.zeros((K_PAD, HIDDEN), jnp.bfloat16)
    w1_t = w1_t.at[:IN_FEATURES, :].set(w1.T.astype(jnp.bfloat16))
    b1_2d = b1.reshape(1, HIDDEN).astype(jnp.float32)

    w2_t = jnp.zeros((HIDDEN, N_PAD), jnp.bfloat16)
    w2_t = w2_t.at[:, :OUT_FEATURES].set(w2.T.astype(jnp.bfloat16))
    b2_2d = jnp.zeros((1, N_PAD), jnp.float32)
    b2_2d = b2_2d.at[:, :OUT_FEATURES].set(b2.astype(jnp.float32))
    return w1_t, b1_2d, w2_t, b2_2d


@partial(jax.jit, static_argnames=("block_b",))
def mlp_forward(x, w1_t, b1_2d, w2_t, b2_2d, *, block_b=DEFAULT_TB):
    """x: (B, 20) f32 -> (B, 10) f32."""
    B = x.shape[0]
    # Batch tile: multiple of 8 sublanes, capped at block_b; pad B up to a multiple.
    tb = min(block_b, _round_up(max(B, 1), 8))
    b_pad = _round_up(B, tb)
    grid = (b_pad // tb,)

    # Pad batch rows and contraction dim with zeros; cast activations to bf16.
    x_p = jnp.zeros((b_pad, K_PAD), jnp.bfloat16)
    x_p = x_p.at[:B, :IN_FEATURES].set(x.astype(jnp.bfloat16))

    out = pl.pallas_call(
        mlp_kernel,
        out_shape=jax.ShapeDtypeStruct((b_pad, N_PAD), jnp.float32),
        grid=grid,
        in_specs=[
            pl.BlockSpec((tb, K_PAD), lambda i: (i, 0)),       # x tile per grid step
            pl.BlockSpec((K_PAD, HIDDEN), lambda i: (0, 0)),   # W1^T, VMEM-resident
            pl.BlockSpec((1, HIDDEN), lambda i: (0, 0)),       # b1,   VMEM-resident
            pl.BlockSpec((HIDDEN, N_PAD), lambda i: (0, 0)),   # W2^T, VMEM-resident
            pl.BlockSpec((1, N_PAD), lambda i: (0, 0)),        # b2,   VMEM-resident
        ],
        out_specs=pl.BlockSpec((tb, N_PAD), lambda i: (i, 0)),
        compiler_params=pltpu.CompilerParams(
            dimension_semantics=("parallel",),          # shard batch across TCs (v7x)
            vmem_limit_bytes=32 * 1024 * 1024,          # explicit, fits v7x's 64 MiB
        ),
    )(x_p, w1_t, b1_2d, w2_t, b2_2d)

    return out[:B, :OUT_FEATURES]


def init_linear(key, out_features, in_features):
    """Deterministic init mimicking torch.nn.Linear default (uniform ±1/sqrt(fan_in))."""
    k_w, k_b = jax.random.split(key)
    bound = 1.0 / math.sqrt(in_features)
    w = jax.random.uniform(k_w, (out_features, in_features),
                           minval=-bound, maxval=bound, dtype=jnp.float32)
    b = jax.random.uniform(k_b, (out_features,),
                           minval=-bound, maxval=bound, dtype=jnp.float32)
    return w, b


def _ref_forward(x, w1, b1, w2, b2):
    return jnp.maximum(x @ w1.T + b1, 0.0) @ w2.T + b2


if __name__ == "__main__":
    key = jax.random.PRNGKey(0)
    k_x, k_l1, k_l2, k_xb = jax.random.split(key, 4)

    # Matches the spec: X = torch.rand(1, 20)
    x = jax.random.uniform(k_x, (1, 20), dtype=jnp.float32)

    w1, b1 = init_linear(k_l1, 256, 20)    # self.hidden = nn.Linear(20, 256)
    w2, b2 = init_linear(k_l2, 10, 256)    # self.out    = nn.Linear(256, 10)

    params = prepare_params(w1, b1, w2, b2)

    # Batch-1 case (the spec's shape).
    out = jax.block_until_ready(mlp_forward(x, *params))
    ref = _ref_forward(x, w1, b1, w2, b2)
    assert out.shape == (1, 10)
    assert jnp.allclose(out, ref, atol=5e-2, rtol=5e-2), float(jnp.max(jnp.abs(out - ref)))

    # Larger batch to exercise the grid / pipelining path (2 grid steps at TB=128).
    xb = jax.random.uniform(k_xb, (256, 20), dtype=jnp.float32)
    outb = jax.block_until_ready(mlp_forward(xb, *params))
    refb = _ref_forward(xb, w1, b1, w2, b2)
    assert outb.shape == (256, 10)
    assert jnp.allclose(outb, refb, atol=5e-2, rtol=5e-2), float(jnp.max(jnp.abs(outb - refb)))

    print("KERNEL_OK")
</pallas_src>

<mosaic_0001>
module attributes {stable_mosaic.version = 11 : i64} {
  func.func @mlp_kernel(%arg0: i32, %arg1: memref<8x128xbf16, #tpu.memory_space<vmem>>, %arg2: memref<128x256xbf16, #tpu.memory_space<vmem>>, %arg3: memref<1x256xf32, #tpu.memory_space<vmem>>, %arg4: memref<256x128xbf16, #tpu.memory_space<vmem>>, %arg5: memref<1x128xf32, #tpu.memory_space<vmem>>, %arg6: memref<8x128xf32, #tpu.memory_space<vmem>>) attributes {dimension_semantics = [#tpu.dimension_semantics<parallel>], iteration_bounds = array<i64: 1>, scalar_prefetch = 0 : i64, scratch_operands = 0 : i64, tpu.core_type = #tpu.core_type<tc>, window_params = [{transform_indices = @transform_0, window_bounds = array<i64: 8, 128>}, {pipeline_mode = #tpu.pipeline_mode<synchronous>, transform_indices = @transform_1, window_bounds = array<i64: 128, 256>}, {pipeline_mode = #tpu.pipeline_mode<synchronous>, transform_indices = @transform_2, window_bounds = array<i64: 1, 256>}, {pipeline_mode = #tpu.pipeline_mode<synchronous>, transform_indices = @transform_3, window_bounds = array<i64: 256, 128>}, {pipeline_mode = #tpu.pipeline_mode<synchronous>, transform_indices = @transform_4, window_bounds = array<i64: 1, 128>}, {transform_indices = @transform_5, window_bounds = array<i64: 8, 128>}]} {
    %c0 = arith.constant 0 : index
    %c0_0 = arith.constant 0 : index
    %0 = vector.load %arg1[%c0, %c0_0] : memref<8x128xbf16, #tpu.memory_space<vmem>>, vector<8x128xbf16>
    %c0_1 = arith.constant 0 : index
    %c0_2 = arith.constant 0 : index
    %1 = vector.load %arg2[%c0_1, %c0_2] : memref<128x256xbf16, #tpu.memory_space<vmem>>, vector<128x256xbf16>
    %cst = arith.constant dense<0.000000e+00> : vector<8x256xf32>
    %2 = tpu.matmul %0, %1, %cst {dimension_numbers = #tpu.dot_dimension_numbers<[1], [0], [0], [1], [0, 0, 1, 1], [], []>} : vector<8x128xbf16>, vector<128x256xbf16>, vector<8x256xf32> -> vector<8x256xf32>
    %c0_3 = arith.constant 0 : index
    %c0_4 = arith.constant 0 : index
    %3 = vector.load %arg3[%c0_3, %c0_4] : memref<1x256xf32, #tpu.memory_space<vmem>>, vector<1x256xf32>
    %4 = vector.broadcast %3 : vector<1x256xf32> to vector<8x256xf32>
    %5 = arith.addf %2, %4 : vector<8x256xf32>
    %cst_5 = arith.constant 0.000000e+00 : f32
    %6 = vector.broadcast %cst_5 : f32 to vector<8x256xf32>
    %7 = arith.maximumf %5, %6 : vector<8x256xf32>
    %8 = arith.truncf %7 : vector<8x256xf32> to vector<8x256xbf16>
    %c0_6 = arith.constant 0 : index
    %c0_7 = arith.constant 0 : index
    %9 = vector.load %arg4[%c0_6, %c0_7] : memref<256x128xbf16, #tpu.memory_space<vmem>>, vector<256x128xbf16>
    %cst_8 = arith.constant dense<0.000000e+00> : vector<8x128xf32>
    %10 = tpu.matmul %8, %9, %cst_8 {dimension_numbers = #tpu.dot_dimension_numbers<[1], [0], [0], [1], [0, 0, 1, 1], [], []>} : vector<8x256xbf16>, vector<256x128xbf16>, vector<8x128xf32> -> vector<8x128xf32>
    %c0_9 = arith.constant 0 : index
    %c0_10 = arith.constant 0 : index
    %11 = vector.load %arg5[%c0_9, %c0_10] : memref<1x128xf32, #tpu.memory_space<vmem>>, vector<1x128xf32>
    %12 = vector.broadcast %11 : vector<1x128xf32> to vector<8x128xf32>
    %13 = arith.addf %10, %12 : vector<8x128xf32>
    %c0_11 = arith.constant 0 : index
    %c0_12 = arith.constant 0 : index
    %14 = vector.load %arg6[%c0_11, %c0_12] : memref<8x128xf32, #tpu.memory_space<vmem>>, vector<8x128xf32>
    tpu.vector_store %arg6[%c0_11, %c0_12], %13 {strides = array<i32>} : memref<8x128xf32, #tpu.memory_space<vmem>>, vector<8x128xf32>,
    return
  }
  func.func @transform_0(%arg0: i32) -> (i32, i32) {
    %c0_i32 = arith.constant 0 : i32
    %c0_i32_0 = arith.constant 0 : i32
    return %arg0, %c0_i32 : i32, i32
  }
  func.func @transform_1(%arg0: i32) -> (i32, i32) {
    %c0_i32 = arith.constant 0 : i32
    %c0_i32_0 = arith.constant 0 : i32
    %c0_i32_1 = arith.constant 0 : i32
    return %c0_i32, %c0_i32_0 : i32, i32
  }
  func.func @transform_2(%arg0: i32) -> (i32, i32) {
    %c0_i32 = arith.constant 0 : i32
    %c0_i32_0 = arith.constant 0 : i32
    %c0_i32_1 = arith.constant 0 : i32
    return %c0_i32, %c0_i32_0 : i32, i32
  }
  func.func @transform_3(%arg0: i32) -> (i32, i32) {
    %c0_i32 = arith.constant 0 : i32
    %c0_i32_0 = arith.constant 0 : i32
    %c0_i32_1 = arith.constant 0 : i32
    return %c0_i32, %c0_i32_0 : i32, i32
  }
  func.func @transform_4(%arg0: i32) -> (i32, i32) {
    %c0_i32 = arith.constant 0 : i32
    %c0_i32_0 = arith.constant 0 : i32
    %c0_i32_1 = arith.constant 0 : i32
    return %c0_i32, %c0_i32_0 : i32, i32
  }
  func.func @transform_5(%arg0: i32) -> (i32, i32) {
    %c0_i32 = arith.constant 0 : i32
    %c0_i32_0 = arith.constant 0 : i32
    return %arg0, %c0_i32 : i32, i32
  }
}

</mosaic_0001>

<llo_original>
// kernel: mlp_forward.1
$region0: #{mlp_forward.1}
  #allocation0 [shape = 'u32[]', space=smem, size = 0x4, offset = 0x4, fixed_abs, tag = 'smem constant byte address 0x4 - core index']
  #allocation1 [shape = 'u32[144,128]{1,0:T(1,128)}', space=vmem, size = 0x12000, scoped, tag = 'internal scratch']
  %s0 = inlined_call_operand.vmem [shape: bf16[8,128], index: 0, kind: input, shape index: {}]
  %s1 = inlined_call_operand.hbm [shape: bf16[128,256], index: 1, kind: input, shape index: {}]
  %s2 = inlined_call_operand.vmem [shape: f32[1,256], index: 2, kind: input, shape index: {}]
  %s3 = inlined_call_operand.hbm [shape: bf16[256,128], index: 3, kind: input, shape index: {}]
  %s4 = inlined_call_operand.vmem [shape: f32[1,128], index: 4, kind: input, shape index: {}]
  %s5 = inlined_call_operand.vmem [shape: f32[8,128], index: 5, kind: output, shape index: {}]
  %s6 = sld [smem:[#allocation0]]
  $region38: #{mlp_forward.1} parent=0
    _
  %s8 = ssub.s32 1, %s6
  %s9 = scalar_select 0, %s8, %s6
  $region1: #{mlp_forward.1} parent=0
    #allocation2 [shape = 'u8[65536]{0}', space=vmem, size = 0x10000, scoped, tag = 'input window, operand 1, single buffered']
    #allocation3 [shape = 's32[1]{0}', space=sflag, size = 0x4, scoped, tag = 'scoped memory for mlp_forward.1']
    #allocation4 [shape = 'u8[65536]{0}', space=vmem, size = 0x10000, scoped, tag = 'input window, operand 3, single buffered']
    #allocation5 [shape = 's32[1]{0}', space=sflag, size = 0x4, scoped, tag = 'scoped memory for mlp_forward.1']
    %10 = vsyncpa [#allocation3], 0
    %11 = vsyncpa [#allocation5], 0
    // Predicated region
    $region2: #{mlp_forward.1} parent=1 // pred_check
      _
    $region3: #{mlp_forward.1} parent=1 // pred_check_branch
      %13 = sbr.rel (0) target = $region5
    $region4: #{mlp_forward.1} parent=1 // pred_region
      _
    $region5: #{mlp_forward.1} parent=1 // pred_fallthru
      _
    // Predicated region
    $region6: #{mlp_forward.1} parent=1 // pred_check
      _
    $region7: #{mlp_forward.1} parent=1 // pred_check_branch
      %15 = sbr.rel (0) target = $region9
    $region8: #{mlp_forward.1} parent=1 // pred_region
      %s17 = ssub.s32 2048, 2048
      %18 = vsyncadd [#allocation3], %s17
      %s19 = sshll.u32 [#allocation2], 4
      %s20 = int_to_ptr.vmem [resolvable:$true] %s19
      %25 = dma.hbm_to_vmem [thread:$0]  %s1, 2048, %s20, [#allocation3], 128, 128, 8
    $region9: #{mlp_forward.1} parent=1 // pred_fallthru
      _
    // Predicated region
    $region10: #{mlp_forward.1} parent=1 // pred_check
      _
    $region11: #{mlp_forward.1} parent=1 // pred_check_branch
      %27 = sbr.rel (0) target = $region13
    $region12: #{mlp_forward.1} parent=1 // pred_region
      _
    $region13: #{mlp_forward.1} parent=1 // pred_fallthru
      _
    // Predicated region
    $region14: #{mlp_forward.1} parent=1 // pred_check
      _
    $region15: #{mlp_forward.1} parent=1 // pred_check_branch
      %29 = sbr.rel (0) target = $region17
    $region16: #{mlp_forward.1} parent=1 // pred_region
      %s31 = ssub.s32 2048, 2048
      %32 = vsyncadd [#allocation5], %s31
      %s33 = sshll.u32 [#allocation4], 4
      %s34 = int_to_ptr.vmem [resolvable:$true] %s33
      %39 = dma.hbm_to_vmem [thread:$0]  %s3, 2048, %s34, [#allocation5], 64, 64, 4
    $region17: #{mlp_forward.1} parent=1 // pred_fallthru
      _
    // Predicated region
    $region18: #{mlp_forward.1} parent=1 // pred_check
      _
    $region19: #{mlp_forward.1} parent=1 // pred_check_branch
      %41 = sbr.rel (0) target = $region21
    $region20: #{mlp_forward.1} parent=1 // pred_region
      _
    $region21: #{mlp_forward.1} parent=1 // pred_fallthru
      _
    // Predicated region
    $region22: #{mlp_forward.1} parent=1 // pred_check
      _
    $region23: #{mlp_forward.1} parent=1 // pred_check_branch
      %43 = sbr.rel (0) target = $region25
    $region24: #{mlp_forward.1} parent=1 // pred_region
      %44 = dma.done [#allocation3], 2048
    $region25: #{mlp_forward.1} parent=1 // pred_fallthru
      _
    // Predicated region
    $region26: #{mlp_forward.1} parent=1 // pred_check
      _
    $region27: #{mlp_forward.1} parent=1 // pred_check_branch
      %46 = sbr.rel (0) target = $region29
    $region28: #{mlp_forward.1} parent=1 // pred_region
      %47 = dma.done [#allocation5], 2048
    $region29: #{mlp_forward.1} parent=1 // pred_fallthru
      _
    %v49 = vld [vmem:[%s0] sm:$0xf]
    %v50 = vld [vmem:[#allocation2] sm:$0xff]
    %v51 = vld [vmem:[#allocation2 + $0x8] sm:$0xff]
    %v52 = vld [vmem:[#allocation2 + $0x10] sm:$0xff]
    %v53 = vld [vmem:[#allocation2 + $0x18] sm:$0xff]
    %v54 = vld [vmem:[#allocation2 + $0x20] sm:$0xff]
    %v55 = vld [vmem:[#allocation2 + $0x28] sm:$0xff]
    %v56 = vld [vmem:[#allocation2 + $0x30] sm:$0xff]
    %v57 = vld [vmem:[#allocation2 + $0x38] sm:$0xff]
    %v58 = vld [vmem:[#allocation2 + $0x40] sm:$0xff]
    %v59 = vld [vmem:[#allocation2 + $0x48] sm:$0xff]
    %v60 = vld [vmem:[#allocation2 + $0x50] sm:$0xff]
    %v61 = vld [vmem:[#allocation2 + $0x58] sm:$0xff]
    %v62 = vld [vmem:[#allocation2 + $0x60] sm:$0xff]
    %v63 = vld [vmem:[#allocation2 + $0x68] sm:$0xff]
    %v64 = vld [vmem:[#allocation2 + $0x70] sm:$0xff]
    %v65 = vld [vmem:[#allocation2 + $0x78] sm:$0xff]
    %v66 = vld [vmem:[%s2] sm:$0x3]
    %v68 = vlaneseq
    %v69 = vshrl.u32 %v68, 7
    %v70 = vsub.s32 0, %v69
    %v71 = vrot.slane %v66, %v70
    %v72 = vlaneseq
    %v73 = vshrl.u32 %v72, 7
    %v74 = vsub.s32 1, %v73
    %v75 = vrot.slane %v66, %v74
    %v94 = vunpack.c.l.b16 %v50
    %v95 = vunpack.c.h.b16 %v50
    %v96 = vunpack.c.l.b16 %v51
    %v97 = vunpack.c.h.b16 %v51
    %v98 = vunpack.c.l.b16 %v52
    %v99 = vunpack.c.h.b16 %v52
    %v100 = vunpack.c.l.b16 %v53
    %v101 = vunpack.c.h.b16 %v53
    %v102 = vunpack.c.l.b16 %v54
    %v103 = vunpack.c.h.b16 %v54
    %v104 = vunpack.c.l.b16 %v55
    %v105 = vunpack.c.h.b16 %v55
    %v106 = vunpack.c.l.b16 %v56
    %v107 = vunpack.c.h.b16 %v56
    %v108 = vunpack.c.l.b16 %v57
    %v109 = vunpack.c.h.b16 %v57
    %v110 = vunpack.c.l.b16 %v58
    %v111 = vunpack.c.h.b16 %v58
    %v112 = vunpack.c.l.b16 %v59
    %v113 = vunpack.c.h.b16 %v59
    %v114 = vunpack.c.l.b16 %v60
    %v115 = vunpack.c.h.b16 %v60
    %v116 = vunpack.c.l.b16 %v61
    %v117 = vunpack.c.h.b16 %v61
    %v118 = vunpack.c.l.b16 %v62
    %v119 = vunpack.c.h.b16 %v62
    %v120 = vunpack.c.l.b16 %v63
    %v121 = vunpack.c.h.b16 %v63
    %v122 = vunpack.c.l.b16 %v64
    %v123 = vunpack.c.h.b16 %v64
    %v124 = vunpack.c.l.b16 %v65
    %v125 = vunpack.c.h.b16 %v65
    %v126 = vpack.c.b16 %v96, %v94
    %v127 = vpack.c.b16 %v97, %v95
    %v128 = vpack.c.b16 %v100, %v98
    %v129 = vpack.c.b16 %v101, %v99
    %v130 = vpack.c.b16 %v104, %v102
    %v131 = vpack.c.b16 %v105, %v103
    %v132 = vpack.c.b16 %v108, %v106
    %v133 = vpack.c.b16 %v109, %v107
    %v134 = vpack.c.b16 %v112, %v110
    %v135 = vpack.c.b16 %v113, %v111
    %v136 = vpack.c.b16 %v116, %v114
    %v137 = vpack.c.b16 %v117, %v115
    %v138 = vpack.c.b16 %v120, %v118
    %v139 = vpack.c.b16 %v121, %v119
    %v140 = vpack.c.b16 %v124, %v122
    %v141 = vpack.c.b16 %v125, %v123
    %158 = vmatprep.subr.bf16.mxu0 %v127
    %159 = vmatpush1.bf16.msra.mxu0 %v126
    %160 = vmatprep.subr.bf16.mxu0 %v129
    %161 = vmatpush1.bf16.msra.mxu0 %v128
    %162 = vmatprep.subr.bf16.mxu0 %v131
    %163 = vmatpush1.bf16.msra.mxu0 %v130
    %164 = vmatprep.subr.bf16.mxu0 %v133
    %165 = vmatpush1.bf16.msra.mxu0 %v132
    %166 = vmatprep.subr.bf16.mxu0 %v135
    %167 = vmatpush1.bf16.msra.mxu0 %v134
    %168 = vmatprep.subr.bf16.mxu0 %v137
    %169 = vmatpush1.bf16.msra.mxu0 %v136
    %170 = vmatprep.subr.bf16.mxu0 %v139
    %171 = vmatpush1.bf16.msra.mxu0 %v138
    %172 = vmatprep.subr.bf16.mxu0 %v141
    %173 = vmatpush1.bf16.msra.mxu0 %v140
    %174 = vmatprep.subr.bf16.mxu0 0
    %175 = vmatpush1.bf16.msra.mxu0 0
    %176 = vmatprep.subr.bf16.mxu0 0
    %177 = vmatpush1.bf16.msra.mxu0 0
    %178 = vmatprep.subr.bf16.mxu0 0
    %179 = vmatpush1.bf16.msra.mxu0 0
    %180 = vmatprep.subr.bf16.mxu0 0
    %181 = vmatpush1.bf16.msra.mxu0 0
    %182 = vmatprep.subr.bf16.mxu0 0
    %183 = vmatpush1.bf16.msra.mxu0 0
    %184 = vmatprep.subr.bf16.mxu0 0
    %185 = vmatpush1.bf16.msra.mxu0 0
    %186 = vmatprep.subr.bf16.mxu0 0
    %187 = vmatpush1.bf16.msra.mxu0 0
    %188 = vmatprep.subr.bf16.mxu0 0
    %189 = vmatpush1.bf16.msra.mxu0 0
    %190 = vmatprep.mubr.bf16.mxu0 0
    %191 = vmatmul.mubr.bf16.gmra.mrb[0].mxu0 %v49
    %v192 = vpop.f32.mrb[0].mxu0
    %v193 = vadd.f32 %v71, %v192
    %v194 = vpop.f32.mrb[0].mxu0
    %v195 = vadd.f32 %v75, %v194
    %v196 = vpop.f32.mrb[0].mxu0
    %v197 = vpop.f32.mrb[0].mxu0
    %198 = vdwg.mxu0
    %v199 = vmax.f32 %v193, 0.0
    %v200 = vmax.f32 %v195, 0.0
    %v201 = vpack.c.bf16 %v199, %v199
    %v202 = vpack.c.bf16 %v200, %v200
    %v203 = vld [vmem:[#allocation4] sm:$0xf]
    %v204 = vld [vmem:[#allocation4 + $0x4] sm:$0xf]
    %v205 = vld [vmem:[#allocation4 + $0x8] sm:$0xf]
    %v206 = vld [vmem:[#allocation4 + $0xc] sm:$0xf]
    %v207 = vld [vmem:[#allocation4 + $0x10] sm:$0xf]
    %v208 = vld [vmem:[#allocation4 + $0x14] sm:$0xf]
    %v209 = vld [vmem:[#allocation4 + $0x18] sm:$0xf]
    %v210 = vld [vmem:[#allocation4 + $0x1c] sm:$0xf]
    %v211 = vld [vmem:[#allocation4 + $0x20] sm:$0xf]
    %v212 = vld [vmem:[#allocation4 + $0x24] sm:$0xf]
    %v213 = vld [vmem:[#allocation4 + $0x28] sm:$0xf]
    %v214 = vld [vmem:[#allocation4 + $0x2c] sm:$0xf]
    %v215 = vld [vmem:[#allocation4 + $0x30] sm:$0xf]
    %v216 = vld [vmem:[#allocation4 + $0x34] sm:$0xf]
    %v217 = vld [vmem:[#allocation4 + $0x38] sm:$0xf]
    %v218 = vld [vmem:[#allocation4 + $0x3c] sm:$0xf]
    %v219 = vld [vmem:[#allocation4 + $0x40] sm:$0xf]
    %v220 = vld [vmem:[#allocation4 + $0x44] sm:$0xf]
    %v221 = vld [vmem:[#allocation4 + $0x48] sm:$0xf]
    %v222 = vld [vmem:[#allocation4 + $0x4c] sm:$0xf]
    %v223 = vld [vmem:[#allocation4 + $0x50] sm:$0xf]
    %v224 = vld [vmem:[#allocation4 + $0x54] sm:$0xf]
    %v225 = vld [vmem:[#allocation4 + $0x58] sm:$0xf]
    %v226 = vld [vmem:[#allocation4 + $0x5c] sm:$0xf]
    %v227 = vld [vmem:[#allocation4 + $0x60] sm:$0xf]
    %v228 = vld [vmem:[#allocation4 + $0x64] sm:$0xf]
    %v229 = vld [vmem:[#allocation4 + $0x68] sm:$0xf]
    %v230 = vld [vmem:[#allocation4 + $0x6c] sm:$0xf]
    %v231 = vld [vmem:[#allocation4 + $0x70] sm:$0xf]
    %v232 = vld [vmem:[#allocation4 + $0x74] sm:$0xf]
    %v233 = vld [vmem:[#allocation4 + $0x78] sm:$0xf]
    %v234 = vld [vmem:[#allocation4 + $0x7c] sm:$0xf]
    %v235 = vld [vmem:[%s4] sm:$0x1]
    %v237 = vlaneseq
    %v238 = vshrl.u32 %v237, 7
    %v239 = vsub.s32 0, %v238
    %v240 = vrot.slane %v235, %v239
    %v274 = vunpack.c.l.b16 %v203
    %v275 = vunpack.c.l.b16 %v204
    %v276 = vunpack.c.l.b16 %v205
    %v277 = vunpack.c.l.b16 %v206
    %v278 = vunpack.c.l.b16 %v207
    %v279 = vunpack.c.l.b16 %v208
    %v280 = vunpack.c.l.b16 %v209
    %v281 = vunpack.c.l.b16 %v210
    %v282 = vunpack.c.l.b16 %v211
    %v283 = vunpack.c.l.b16 %v212
    %v284 = vunpack.c.l.b16 %v213
    %v285 = vunpack.c.l.b16 %v214
    %v286 = vunpack.c.l.b16 %v215
    %v287 = vunpack.c.l.b16 %v216
    %v288 = vunpack.c.l.b16 %v217
    %v289 = vunpack.c.l.b16 %v218
    %v290 = vunpack.c.l.b16 %v219
    %v291 = vunpack.c.l.b16 %v220
    %v292 = vunpack.c.l.b16 %v221
    %v293 = vunpack.c.l.b16 %v222
    %v294 = vunpack.c.l.b16 %v223
    %v295 = vunpack.c.l.b16 %v224
    %v296 = vunpack.c.l.b16 %v225
    %v297 = vunpack.c.l.b16 %v226
    %v298 = vunpack.c.l.b16 %v227
    %v299 = vunpack.c.l.b16 %v228
    %v300 = vunpack.c.l.b16 %v229
    %v301 = vunpack.c.l.b16 %v230
    %v302 = vunpack.c.l.b16 %v231
    %v303 = vunpack.c.l.b16 %v232
    %v304 = vunpack.c.l.b16 %v233
    %v305 = vunpack.c.l.b16 %v234
    %v306 = vpack.c.b16 %v275, %v274
    %v307 = vpack.c.b16 %v277, %v276
    %v308 = vpack.c.b16 %v279, %v278
    %v309 = vpack.c.b16 %v281, %v280
    %v310 = vpack.c.b16 %v283, %v282
    %v311 = vpack.c.b16 %v285, %v284
    %v312 = vpack.c.b16 %v287, %v286
    %v313 = vpack.c.b16 %v289, %v288
    %v314 = vpack.c.b16 %v291, %v290
    %v315 = vpack.c.b16 %v293, %v292
    %v316 = vpack.c.b16 %v295, %v294
    %v317 = vpack.c.b16 %v297, %v296
    %v318 = vpack.c.b16 %v299, %v298
    %v319 = vpack.c.b16 %v301, %v300
    %v320 = vpack.c.b16 %v303, %v302
    %v321 = vpack.c.b16 %v305, %v304
    %338 = vmatprep.subr.bf16.mxu0 0
    %339 = vmatpush1.bf16.msra.mxu0 %v306
    %340 = vmatprep.subr.bf16.mxu0 0
    %341 = vmatpush1.bf16.msra.mxu0 %v307
    %342 = vmatprep.subr.bf16.mxu0 0
    %343 = vmatpush1.bf16.msra.mxu0 %v308
    %344 = vmatprep.subr.bf16.mxu0 0
    %345 = vmatpush1.bf16.msra.mxu0 %v309
    %346 = vmatprep.subr.bf16.mxu0 0
    %347 = vmatpush1.bf16.msra.mxu0 %v310
    %348 = vmatprep.subr.bf16.mxu0 0
    %349 = vmatpush1.bf16.msra.mxu0 %v311
    %350 = vmatprep.subr.bf16.mxu0 0
    %351 = vmatpush1.bf16.msra.mxu0 %v312
    %352 = vmatprep.subr.bf16.mxu0 0
    %353 = vmatpush1.bf16.msra.mxu0 %v313
    %354 = vmatprep.subr.bf16.mxu0 0
    %355 = vmatpush1.bf16.msra.mxu0 %v314
    %356 = vmatprep.subr.bf16.mxu0 0
    %357 = vmatpush1.bf16.msra.mxu0 %v315
    %358 = vmatprep.subr.bf16.mxu0 0
    %359 = vmatpush1.bf16.msra.mxu0 %v316
    %360 = vmatprep.subr.bf16.mxu0 0
    %361 = vmatpush1.bf16.msra.mxu0 %v317
    %362 = vmatprep.subr.bf16.mxu0 0
    %363 = vmatpush1.bf16.msra.mxu0 %v318
    %364 = vmatprep.subr.bf16.mxu0 0
    %365 = vmatpush1.bf16.msra.mxu0 %v319
    %366 = vmatprep.subr.bf16.mxu0 0
    %367 = vmatpush1.bf16.msra.mxu0 %v320
    %368 = vmatprep.subr.bf16.mxu0 0
    %369 = vmatpush1.bf16.msra.mxu0 %v321
    %370 = vmatprep.mubr.bf16.mxu0 %v202
    %371 = vmatmul.mubr.bf16.gmra.mrb[0].mxu0 %v201
    %v372 = vpop.f32.mrb[0].mxu0
    %v373 = vadd.f32 %v240, %v372
    %v374 = vpop.f32.mrb[0].mxu0
    %v375 = vpop.f32.mrb[0].mxu0
    %v376 = vpop.f32.mrb[0].mxu0
    %377 = vdwg.mxu0
    %378 = vst [vmem:[%s5] sm:$0xff] %v373
    // Predicated region
    $region30: #{mlp_forward.1} parent=1 // pred_check
      _
    $region31: #{mlp_forward.1} parent=1 // pred_check_branch
      %380 = sbr.rel (0) target = $region33
    $region32: #{mlp_forward.1} parent=1 // pred_region
      _
    $region33: #{mlp_forward.1} parent=1 // pred_fallthru
      _
    // Predicated region
    $region34: #{mlp_forward.1} parent=1 // pred_check
      _
    $region35: #{mlp_forward.1} parent=1 // pred_check_branch
      %382 = sbr.rel (0) target = $region37
    $region36: #{mlp_forward.1} parent=1 // pred_region
      _
    $region37: #{mlp_forward.1} parent=1 // pred_fallthru
      _
    %383 = vsyncpa [#allocation3], 1
    %384 = vsyncpa [#allocation5], 1

</llo_original>
